<compile_context>
chip_gen: v6e
topology: v6e:2x2x1
jax: 0.10.0
libtpu: 0.0.40
codegen_flags: <defaults>
</compile_context>

<pallas_src>
import jax
import jax.numpy as jnp
from jax.experimental import pallas as pl
from jax.experimental.pallas import tpu as pltpu


# ---------------------------------------------------------------------------
# Helpers
# ---------------------------------------------------------------------------
def _round_up(x, m):
    return (x + m - 1) // m * m


def _pick_seq_chunk(T, cap=8):
    """Largest divisor of T that is <= cap (timesteps per grid step)."""
    for u in range(min(T, cap), 0, -1):
        if T % u == 0:
            return u
    return 1


def _pick_lane_tile(n, cap=2048):
    """Largest multiple of 128 that divides n and is <= cap (vocab tile)."""
    best, t = 128, 128
    while t <= min(n, cap):
        if n % t == 0:
            best = t
        t += 128
    return best


def _vmem_limit_bytes():
    # ~0.8 x physical VMEM: ≈102 MiB on v5e/v6e (128 MiB), ≈51 MiB on v7x (64 MiB).
    try:
        cap = pltpu.get_tpu_info().vmem_capacity_bytes
    except Exception:
        cap = 64 * 1024 * 1024
    return int(cap) * 4 // 5


def _vmem_full():
    # Whole array resident in VMEM, single buffer (no pipeline double-buffering).
    return pl.BlockSpec(memory_space=pltpu.MemorySpace.VMEM)


# ---------------------------------------------------------------------------
# Kernel 1: fused embedding gather (one-hot on the MXU) + input projection,
# batched over ALL T*B tokens.  gates_x = onehot(tok) @ emb @ W_ih^T + bias.
# ---------------------------------------------------------------------------
def embed_inproj_kernel(tok_ref, emb_ref, wih_ref, bias_ref, xg_ref):
    R = tok_ref.shape[0]
    Vp = emb_ref.shape[0]
    onehot = (tok_ref[...] ==
              jax.lax.broadcasted_iota(jnp.int32, (R, Vp), 1)).astype(jnp.bfloat16)
    # Exact row select: one nonzero bf16 term per row, f32 accumulation.
    x = jnp.dot(onehot, emb_ref[...], preferred_element_type=jnp.float32)   # (R, Ep)
    xg_ref[...] = (jnp.dot(x.astype(jnp.bfloat16), wih_ref[...],
                           preferred_element_type=jnp.float32)
                   + bias_ref[...])                                          # (R, 4Hp)


# ---------------------------------------------------------------------------
# Kernel 2: sequential LSTM recurrence.  U timesteps per grid step; h/c carry
# lives in the resident output blocks hfin/cfin (constant index_map).
# ---------------------------------------------------------------------------
def lstm_recurrent_kernel(xg_ref, h0_ref, c0_ref, whh_ref,
                          hseq_ref, hfin_ref, cfin_ref):
    g = pl.program_id(0)

    @pl.when(g == 0)
    def _init():
        hfin_ref[...] = h0_ref[...]
        cfin_ref[...] = c0_ref[...]

    U = xg_ref.shape[0]
    Hp = h0_ref.shape[-1]
    h = hfin_ref[...]                   # f32 carry
    c = cfin_ref[...]
    whh = whh_ref[...]                  # (Hp, 4Hp) bf16, resident

    for u in range(U):                  # unrolled at trace time (U <= 8)
        gates = xg_ref[u] + jnp.dot(h.astype(jnp.bfloat16), whh,
                                    preferred_element_type=jnp.float32)
        # sigmoid only on i|f and o slabs (vreg-aligned); tanh only on g.
        if_g = jax.nn.sigmoid(gates[:, :2 * Hp])
        i_g = if_g[:, :Hp]
        f_g = if_g[:, Hp:]
        g_g = jnp.tanh(gates[:, 2 * Hp:3 * Hp])
        o_g = jax.nn.sigmoid(gates[:, 3 * Hp:])
        c = f_g * c + i_g * g_g
        h = o_g * jnp.tanh(c)
        hseq_ref[u] = h.astype(hseq_ref.dtype)      # bf16 per-step hidden

    hfin_ref[...] = h
    cfin_ref[...] = c


# ---------------------------------------------------------------------------
# Kernel 3: batched fc over all T*B hidden states, tiled over vocab ("parallel"
# grid axis -> W_fc streamed, TC-shardable on v7x).
# ---------------------------------------------------------------------------
def fc_kernel(h_ref, wfc_ref, bfc_ref, out_ref):
    out_ref[...] = (jnp.dot(h_ref[...], wfc_ref[...],
                            preferred_element_type=jnp.float32)
                    + bfc_ref[...]).astype(out_ref.dtype)


# ---------------------------------------------------------------------------
# Parameter preparation (done ONCE, not per call)
# ---------------------------------------------------------------------------
def prepare_params(params):
    emb = params["embedding"].astype(jnp.float32)   # (V, E)
    w_ih, w_hh = params["w_ih"], params["w_hh"]     # (4H, E), (4H, H)
    b_ih, b_hh = params["b_ih"], params["b_hh"]     # (4H,)
    w_fc, b_fc = params["w_fc"], params["b_fc"]     # (V, H), (V,)

    V, E = emb.shape
    H = w_hh.shape[1]
    Vp, Ep, Hp = _round_up(V, 128), _round_up(E, 128), _round_up(H, 128)

    def pad_gate_rows(w, in_dim, in_pad):
        # (4H, in_dim) -> per-gate zero padding -> (4*Hp, in_pad)
        w4 = w.reshape(4, H, in_dim)
        w4 = jnp.pad(w4, ((0, 0), (0, Hp - H), (0, in_pad - in_dim)))
        return w4.reshape(4 * Hp, in_pad)

    wih_t = pad_gate_rows(w_ih, E, Ep).T.astype(jnp.bfloat16)    # (Ep, 4Hp)
    whh_t = pad_gate_rows(w_hh, H, Hp).T.astype(jnp.bfloat16)    # (Hp, 4Hp)
    bias = (b_ih + b_hh).reshape(4, H)
    bias = jnp.pad(bias, ((0, 0), (0, Hp - H))).reshape(1, 4 * Hp).astype(jnp.float32)
    wfc_t = jnp.pad(w_fc, ((0, Vp - V), (0, Hp - H))).T.astype(jnp.bfloat16)  # (Hp, Vp)
    bfc = jnp.pad(b_fc, (0, Vp - V)).reshape(1, Vp).astype(jnp.float32)
    emb_p = jnp.pad(emb, ((0, Vp - V), (0, Ep - E))).astype(jnp.bfloat16)     # (Vp, Ep)

    return dict(emb=emb_p, wih_t=wih_t, whh_t=whh_t, bias=bias,
                wfc_t=wfc_t, bfc=bfc, V=V, E=E, H=H, Vp=Vp, Ep=Ep, Hp=Hp)


# ---------------------------------------------------------------------------
# Wrappers
# ---------------------------------------------------------------------------
def rnn_forward_sequence(tokens, hidden, cell, prep):
    """Run T LSTM decode steps (3 fused Pallas phases).
       tokens: (B, T) int32; hidden, cell: (1, B, H) f32.
       returns logits (B, T, V), hidden (1, B, H), cell (1, B, H)."""
    B, T = tokens.shape
    V, E, H = prep["V"], prep["E"], prep["H"]
    Vp, Ep, Hp = prep["Vp"], prep["Ep"], prep["Hp"]
    Bp = _round_up(B, 8)
    U = _pick_seq_chunk(T)               # timesteps per grid step
    G = T // U
    R = T * Bp                           # total token rows (row r = t*Bp + b)
    vmem_limit = _vmem_limit_bytes()

    tok = jnp.zeros((T, Bp), jnp.int32).at[:, :B].set(tokens.T).reshape(R, 1)
    h0 = jnp.zeros((Bp, Hp), jnp.float32).at[:B, :H].set(hidden[0])
    c0 = jnp.zeros((Bp, Hp), jnp.float32).at[:B, :H].set(cell[0])

    # ---- Phase 1: embedding gather + input projection, batched over all rows.
    xg_flat = pl.pallas_call(
        embed_inproj_kernel,
        out_shape=jax.ShapeDtypeStruct((R, 4 * Hp), jnp.float32),
        in_specs=[_vmem_full(), _vmem_full(), _vmem_full(), _vmem_full()],
        out_specs=_vmem_full(),
        compiler_params=pltpu.CompilerParams(vmem_limit_bytes=vmem_limit),
        cost_estimate=pl.CostEstimate(
            flops=2 * R * Vp * Ep + 2 * R * Ep * 4 * Hp,
            transcendentals=0,
            bytes_accessed=Vp * Ep * 2 + Ep * 4 * Hp * 2 + R * 4 * Hp * 4),
    )(tok, prep["emb"], prep["wih_t"], prep["bias"])
    xg = xg_flat.reshape(T, Bp, 4 * Hp)

    # ---- Phase 2: sequential recurrence (only h @ W_hh^T on the serial path).
    hseq, h_fin, c_fin = pl.pallas_call(
        lstm_recurrent_kernel,
        grid=(G,),
        in_specs=[
            pl.BlockSpec((U, Bp, 4 * Hp), lambda g: (g, 0, 0)),   # streamed xgates
            _vmem_full(),                                         # h0 (single buffer)
            _vmem_full(),                                         # c0
            _vmem_full(),                                         # W_hh^T (resident)
        ],
        out_specs=(
            pl.BlockSpec((U, Bp, Hp), lambda g: (g, 0, 0)),       # per-step hidden (bf16)
            pl.BlockSpec((Bp, Hp), lambda g: (0, 0)),             # final h == carry
            pl.BlockSpec((Bp, Hp), lambda g: (0, 0)),             # final c == carry
        ),
        out_shape=(
            jax.ShapeDtypeStruct((T, Bp, Hp), jnp.bfloat16),
            jax.ShapeDtypeStruct((Bp, Hp), jnp.float32),
            jax.ShapeDtypeStruct((Bp, Hp), jnp.float32),
        ),
        compiler_params=pltpu.CompilerParams(
            dimension_semantics=("arbitrary",), vmem_limit_bytes=vmem_limit),
        cost_estimate=pl.CostEstimate(
            flops=2 * T * Bp * Hp * 4 * Hp,
            transcendentals=T * Bp * 5 * Hp,
            bytes_accessed=R * 4 * Hp * 4 + R * Hp * 2 + Hp * 4 * Hp * 2),
    )(xg, h0, c0, prep["whh_t"])

    # ---- Phase 3: batched fc for all T*B hidden states, vocab-tiled.
    TV = _pick_lane_tile(Vp)
    logits_flat = pl.pallas_call(
        fc_kernel,
        grid=(Vp // TV,),
        in_specs=[
            _vmem_full(),                                   # hidden states (bf16, resident)
            pl.BlockSpec((Hp, TV), lambda j: (0, j)),       # streamed W_fc^T tiles
            pl.BlockSpec((1, TV), lambda j: (0, j)),        # b_fc tile
        ],
        out_specs=pl.BlockSpec((R, TV), lambda j: (0, j)),
        out_shape=jax.ShapeDtypeStruct((R, Vp), jnp.float32),
        compiler_params=pltpu.CompilerParams(
            dimension_semantics=("parallel",), vmem_limit_bytes=vmem_limit),
        cost_estimate=pl.CostEstimate(
            flops=2 * R * Hp * Vp, transcendentals=0,
            bytes_accessed=R * Hp * 2 + Hp * Vp * 2 + R * Vp * 4),
    )(hseq.reshape(R, Hp), prep["wfc_t"], prep["bfc"])

    logits = logits_flat.reshape(T, Bp, Vp)[:, :B, :V].transpose(1, 0, 2)   # (B, T, V)
    return logits, h_fin[None, :B, :H], c_fin[None, :B, :H]


def rnn_forward(x_tokens, hidden, cell, prep):
    """Mirrors RNN.forward (single step, seq_len==1):
       x_tokens: (B,) int32; hidden, cell: (1, B, H).
       returns (logits (B, V), hidden (1, B, H), cell (1, B, H))."""
    logits_seq, h_new, c_new = rnn_forward_sequence(x_tokens[:, None], hidden, cell, prep)
    return logits_seq[:, 0, :], h_new, c_new


# ---------------------------------------------------------------------------
# Pure-JAX reference (mimics the kernel's bf16 weight/operand rounding)
# ---------------------------------------------------------------------------
def reference_sequence(tokens, hidden, cell, params):
    bf = lambda a: a.astype(jnp.bfloat16).astype(jnp.float32)
    emb, w_ih, w_hh = params["embedding"], params["w_ih"], params["w_hh"]
    b_ih, b_hh = params["b_ih"], params["b_hh"]
    w_fc, b_fc = params["w_fc"], params["b_fc"]
    H = w_hh.shape[1]
    wih_t, whh_t, wfc_t = bf(w_ih).T, bf(w_hh).T, bf(w_fc).T
    bias = b_ih + b_hh
    h, c = hidden[0], cell[0]
    outs = []
    for t in range(tokens.shape[1]):
        x = emb[tokens[:, t]]
        gates = bf(x) @ wih_t + bf(h) @ whh_t + bias
        i = jax.nn.sigmoid(gates[:, 0 * H:1 * H])
        f = jax.nn.sigmoid(gates[:, 1 * H:2 * H])
        g = jnp.tanh(gates[:, 2 * H:3 * H])
        o = jax.nn.sigmoid(gates[:, 3 * H:4 * H])
        c = f * c + i * g
        h = o * jnp.tanh(c)
        outs.append(bf(h) @ wfc_t + b_fc)
    return jnp.stack(outs, axis=1), h[None], c[None]


def init_params(key, vocab_size, embed_dim, hidden_size):
    ks = jax.random.split(key, 7)
    scale = 0.1
    return {
        "embedding": scale * jax.random.normal(ks[0], (vocab_size, embed_dim), jnp.float32),
        "w_ih": scale * jax.random.normal(ks[1], (4 * hidden_size, embed_dim), jnp.float32),
        "w_hh": scale * jax.random.normal(ks[2], (4 * hidden_size, hidden_size), jnp.float32),
        "b_ih": scale * jax.random.normal(ks[3], (4 * hidden_size,), jnp.float32),
        "b_hh": scale * jax.random.normal(ks[4], (4 * hidden_size,), jnp.float32),
        "w_fc": scale * jax.random.normal(ks[5], (vocab_size, hidden_size), jnp.float32),
        "b_fc": scale * jax.random.normal(ks[6], (vocab_size,), jnp.float32),
    }


if __name__ == "__main__":
    VOCAB, EMBED, HIDDEN, BATCH, SEQ = 32, 16, 32, 8, 6

    key = jax.random.PRNGKey(0)
    pkey, xkey = jax.random.split(key)
    params = init_params(pkey, VOCAB, EMBED, HIDDEN)
    prep = prepare_params(params)          # transpose / fold / pad / bf16 ONCE

    tokens = jax.random.randint(xkey, (BATCH, SEQ), 0, VOCAB, dtype=jnp.int32)
    hidden = jnp.zeros((1, BATCH, HIDDEN), jnp.float32)   # init_hidden
    cell = jnp.zeros((1, BATCH, HIDDEN), jnp.float32)

    # Single step: exactly RNN.forward(x, hidden, cell)
    logits, h1, c1 = rnn_forward(tokens[:, 0], hidden, cell, prep)
    # Multi-step decode: batched input/fc projections + fused recurrence
    logits_seq, hT, cT = rnn_forward_sequence(tokens, hidden, cell, prep)
    jax.block_until_ready((logits, h1, c1, logits_seq, hT, cT))

    # Shape checks (single step matches the PyTorch forward contract)
    assert logits.shape == (BATCH, VOCAB)
    assert h1.shape == (1, BATCH, HIDDEN) and c1.shape == (1, BATCH, HIDDEN)
    assert logits_seq.shape == (BATCH, SEQ, VOCAB)

    # Numerical check vs bf16-matched pure-JAX reference
    ref_seq, ref_h, ref_c = reference_sequence(tokens, hidden, cell, params)
    assert jnp.allclose(logits, ref_seq[:, 0, :], atol=2e-2, rtol=2e-2)
    assert jnp.allclose(logits_seq, ref_seq, atol=2e-2, rtol=2e-2)
    assert jnp.allclose(hT, ref_h, atol=2e-2, rtol=2e-2)
    assert jnp.allclose(cT, ref_c, atol=2e-2, rtol=2e-2)

    print("KERNEL_OK")
</pallas_src>

<mosaic_0001>
module attributes {stable_mosaic.version = 11 : i64} {
  func.func @embed_inproj_kernel(%arg0: memref<8x1xi32, #tpu.memory_space<vmem>>, %arg1: memref<128x128xbf16, #tpu.memory_space<vmem>>, %arg2: memref<128x512xbf16, #tpu.memory_space<vmem>>, %arg3: memref<1x512xf32, #tpu.memory_space<vmem>>, %arg4: memref<8x512xf32, #tpu.memory_space<vmem>>) attributes {dimension_semantics = [], scalar_prefetch = 0 : i64, scratch_operands = 0 : i64, tpu.core_type = #tpu.core_type<tc>} {
    %c0 = arith.constant 0 : index
    %c0_0 = arith.constant 0 : index
    %0 = vector.load %arg0[%c0, %c0_0] : memref<8x1xi32, #tpu.memory_space<vmem>>, vector<8x1xi32>
    %1 = tpu.iota {dimensions = array<i32: 1>} : vector<8x128xi32>
    %2 = vector.broadcast %0 : vector<8x1xi32> to vector<8x128xi32>
    %3 = arith.cmpi eq, %2, %1 : vector<8x128xi32>
    %4 = arith.extui %3 : vector<8x128xi1> to vector<8x128xi32>
    %5 = arith.sitofp %4 : vector<8x128xi32> to vector<8x128xf32>
    %6 = arith.truncf %5 : vector<8x128xf32> to vector<8x128xbf16>
    %c0_1 = arith.constant 0 : index
    %c0_2 = arith.constant 0 : index
    %7 = vector.load %arg1[%c0_1, %c0_2] : memref<128x128xbf16, #tpu.memory_space<vmem>>, vector<128x128xbf16>
    %cst = arith.constant dense<0.000000e+00> : vector<8x128xf32>
    %8 = tpu.matmul %6, %7, %cst {dimension_numbers = #tpu.dot_dimension_numbers<[1], [0], [0], [1], [0, 0, 1, 1], [], []>} : vector<8x128xbf16>, vector<128x128xbf16>, vector<8x128xf32> -> vector<8x128xf32>
    %9 = arith.truncf %8 : vector<8x128xf32> to vector<8x128xbf16>
    %c0_3 = arith.constant 0 : index
    %c0_4 = arith.constant 0 : index
    %10 = vector.load %arg2[%c0_3, %c0_4] : memref<128x512xbf16, #tpu.memory_space<vmem>>, vector<128x512xbf16>
    %cst_5 = arith.constant dense<0.000000e+00> : vector<8x512xf32>
    %11 = tpu.matmul %9, %10, %cst_5 {dimension_numbers = #tpu.dot_dimension_numbers<[1], [0], [0], [1], [0, 0, 1, 1], [], []>} : vector<8x128xbf16>, vector<128x512xbf16>, vector<8x512xf32> -> vector<8x512xf32>
    %c0_6 = arith.constant 0 : index
    %c0_7 = arith.constant 0 : index
    %12 = vector.load %arg3[%c0_6, %c0_7] : memref<1x512xf32, #tpu.memory_space<vmem>>, vector<1x512xf32>
    %13 = vector.broadcast %12 : vector<1x512xf32> to vector<8x512xf32>
    %14 = arith.addf %11, %13 : vector<8x512xf32>
    %c0_8 = arith.constant 0 : index
    %c0_9 = arith.constant 0 : index
    %15 = vector.load %arg4[%c0_8, %c0_9] : memref<8x512xf32, #tpu.memory_space<vmem>>, vector<8x512xf32>
    tpu.vector_store %arg4[%c0_8, %c0_9], %14 {strides = array<i32>} : memref<8x512xf32, #tpu.memory_space<vmem>>, vector<8x512xf32>,
    return
  }
}

</mosaic_0001>

<llo_original>
// kernel: tpu_custom_call.1
$region0: #{tpu_custom_call.1}
  #allocation0 [shape = 'u32[]', space=smem, size = 0x4, offset = 0x4, fixed_abs, tag = 'smem constant byte address 0x4 - core index']
  #allocation1 [shape = 'u32[144,128]{1,0:T(1,128)}', space=vmem, size = 0x12000, scoped, tag = 'internal scratch']
  %s0 = inlined_call_operand.vmem [shape: s32[8,1], index: 0, kind: input, shape index: {}]
  %s1 = inlined_call_operand.hbm [shape: bf16[128,128], index: 1, kind: input, shape index: {}]
  %s2 = inlined_call_operand.hbm [shape: bf16[128,512], index: 2, kind: input, shape index: {}]
  %s3 = inlined_call_operand.vmem [shape: f32[1,512], index: 3, kind: input, shape index: {}]
  %s4 = inlined_call_operand.hbm [shape: f32[8,512], index: 4, kind: output, shape index: {}]
  %s5 = sld [smem:[#allocation0]]
  $region34: #{tpu_custom_call.1} parent=0
    _
  %s7 = ssub.s32 1, %s5
  %s8 = scalar_select 0, %s7, %s5
  $region1: #{tpu_custom_call.1} parent=0
    #allocation2 [shape = 'u8[32768]{0}', space=vmem, size = 0x8000, scoped, tag = 'input window, operand 1, single buffered']
    #allocation3 [shape = 's32[1]{0}', space=sflag, size = 0x4, scoped, tag = 'scoped memory for tpu_custom_call.1']
    #allocation4 [shape = 's32[1]{0}', space=sflag, size = 0x4, scoped, tag = 'scoped memory for tpu_custom_call.1']
    #allocation5 [shape = 'u8[131072]{0}', space=vmem, size = 0x20000, scoped, tag = 'input window, operand 2, single buffered']
    #allocation6 [shape = 's32[1]{0}', space=sflag, size = 0x4, scoped, tag = 'scoped memory for tpu_custom_call.1']
    #allocation7 [shape = 'u8[16384]{0}', space=vmem, size = 0x4000, scoped, tag = 'output window, operand 0, single buffered']
    %9 = vsyncpa [#allocation3], 0
    %10 = vsyncpa [#allocation6], 0
    %11 = vsyncpa [#allocation4], 0
    // Predicated region
    $region2: #{tpu_custom_call.1} parent=1 // pred_check
      _
    $region3: #{tpu_custom_call.1} parent=1 // pred_check_branch
      %13 = sbr.rel (0) target = $region5
    $region4: #{tpu_custom_call.1} parent=1 // pred_region
      _
    $region5: #{tpu_custom_call.1} parent=1 // pred_fallthru
      _
    // Predicated region
    $region6: #{tpu_custom_call.1} parent=1 // pred_check
      _
    $region7: #{tpu_custom_call.1} parent=1 // pred_check_branch
      %15 = sbr.rel (0) target = $region9
    $region8: #{tpu_custom_call.1} parent=1 // pred_region
      %s17 = ssub.s32 1024, 1024
      %18 = vsyncadd [#allocation3], %s17
      %s19 = sshll.u32 [#allocation2], 4
      %s20 = int_to_ptr.vmem [resolvable:$true] %s19
      %25 = dma.hbm_to_vmem [thread:$0]  %s1, 1024, %s20, [#allocation3], 64, 64, 4
    $region9: #{tpu_custom_call.1} parent=1 // pred_fallthru
      _
    // Predicated region
    $region10: #{tpu_custom_call.1} parent=1 // pred_check
      _
    $region11: #{tpu_custom_call.1} parent=1 // pred_check_branch
      %27 = sbr.rel (0) target = $region13
    $region12: #{tpu_custom_call.1} parent=1 // pred_region
      %s29 = ssub.s32 4096, 4096
      %30 = vsyncadd [#allocation6], %s29
      %s31 = sshll.u32 [#allocation5], 4
      %s32 = int_to_ptr.vmem [resolvable:$true] %s31
      %37 = dma.hbm_to_vmem [thread:$0]  %s2, 4096, %s32, [#allocation6], 256, 256, 16
    $region13: #{tpu_custom_call.1} parent=1 // pred_fallthru
      _
    // Predicated region
    $region14: #{tpu_custom_call.1} parent=1 // pred_check
      _
    $region15: #{tpu_custom_call.1} parent=1 // pred_check_branch
      %39 = sbr.rel (0) target = $region17
    $region16: #{tpu_custom_call.1} parent=1 // pred_region
      _
    $region17: #{tpu_custom_call.1} parent=1 // pred_fallthru
      _
    // Predicated region
    $region18: #{tpu_custom_call.1} parent=1 // pred_check
      _
    $region19: #{tpu_custom_call.1} parent=1 // pred_check_branch
      %41 = sbr.rel (0) target = $region21
    $region20: #{tpu_custom_call.1} parent=1 // pred_region
      %42 = dma.done [#allocation3], 1024
    $region21: #{tpu_custom_call.1} parent=1 // pred_fallthru
      _
    // Predicated region
    $region22: #{tpu_custom_call.1} parent=1 // pred_check
      _
    $region23: #{tpu_custom_call.1} parent=1 // pred_check_branch
      %44 = sbr.rel (0) target = $region25
    $region24: #{tpu_custom_call.1} parent=1 // pred_region
      %45 = dma.done [#allocation6], 4096
    $region25: #{tpu_custom_call.1} parent=1 // pred_fallthru
      _
    %v47 = vld [vmem:[%s0] sm:$0xff]
    %v48 = vlaneseq
    %v49 = vand.u32 %v48, 127
    %50 = vset.pattern.permute.xlu0 0
    %51 = vperm.xlu0 %50, %v47
    %v52 = vpop.permute.xlu0 %51
    %vm53 = vcmp.eq.s32.totalorder %v52, %v49
    %v54 = vsel %vm53, 1, 0
    %v55 = vcvt.s32.f32 %v54
    %v56 = vpack.c.bf16 %v55, %v55
    %v57 = vld [vmem:[#allocation2] sm:$0xf]
    %v58 = vld [vmem:[#allocation2 + $0x4] sm:$0xf]
    %v59 = vld [vmem:[#allocation2 + $0x8] sm:$0xf]
    %v60 = vld [vmem:[#allocation2 + $0xc] sm:$0xf]
    %v61 = vld [vmem:[#allocation2 + $0x10] sm:$0xf]
    %v62 = vld [vmem:[#allocation2 + $0x14] sm:$0xf]
    %v63 = vld [vmem:[#allocation2 + $0x18] sm:$0xf]
    %v64 = vld [vmem:[#allocation2 + $0x1c] sm:$0xf]
    %v65 = vld [vmem:[#allocation2 + $0x20] sm:$0xf]
    %v66 = vld [vmem:[#allocation2 + $0x24] sm:$0xf]
    %v67 = vld [vmem:[#allocation2 + $0x28] sm:$0xf]
    %v68 = vld [vmem:[#allocation2 + $0x2c] sm:$0xf]
    %v69 = vld [vmem:[#allocation2 + $0x30] sm:$0xf]
    %v70 = vld [vmem:[#allocation2 + $0x34] sm:$0xf]
    %v71 = vld [vmem:[#allocation2 + $0x38] sm:$0xf]
    %v72 = vld [vmem:[#allocation2 + $0x3c] sm:$0xf]
    %v89 = vunpack.c.l.b16 %v57
    %v90 = vunpack.c.l.b16 %v58
    %v91 = vunpack.c.l.b16 %v59
    %v92 = vunpack.c.l.b16 %v60
    %v93 = vunpack.c.l.b16 %v61
    %v94 = vunpack.c.l.b16 %v62
    %v95 = vunpack.c.l.b16 %v63
    %v96 = vunpack.c.l.b16 %v64
    %v97 = vunpack.c.l.b16 %v65
    %v98 = vunpack.c.l.b16 %v66
    %v99 = vunpack.c.l.b16 %v67
    %v100 = vunpack.c.l.b16 %v68
    %v101 = vunpack.c.l.b16 %v69
    %v102 = vunpack.c.l.b16 %v70
    %v103 = vunpack.c.l.b16 %v71
    %v104 = vunpack.c.l.b16 %v72
    %v105 = vpack.c.b16 %v90, %v89
    %v106 = vpack.c.b16 %v92, %v91
    %v107 = vpack.c.b16 %v94, %v93
    %v108 = vpack.c.b16 %v96, %v95
    %v109 = vpack.c.b16 %v98, %v97
    %v110 = vpack.c.b16 %v100, %v99
    %v111 = vpack.c.b16 %v102, %v101
    %v112 = vpack.c.b16 %v104, %v103
    %121 = vmatprep.subr.bf16.mxu0 0
    %122 = vmatpush1.bf16.msra.mxu0 %v112
    %123 = vmatprep.subr.bf16.mxu0 0
    %124 = vmatpush1.bf16.msra.mxu0 %v111
    %125 = vmatprep.subr.bf16.mxu0 0
    %126 = vmatpush1.bf16.msra.mxu0 %v110
    %127 = vmatprep.subr.bf16.mxu0 0
    %128 = vmatpush1.bf16.msra.mxu0 %v109
    %129 = vmatprep.subr.bf16.mxu0 0
    %130 = vmatpush1.bf16.msra.mxu0 %v108
    %131 = vmatprep.subr.bf16.mxu0 0
    %132 = vmatpush1.bf16.msra.mxu0 %v107
    %133 = vmatprep.subr.bf16.mxu0 0
    %134 = vmatpush1.bf16.msra.mxu0 %v106
    %135 = vmatprep.subr.bf16.mxu0 0
    %136 = vmatpush1.bf16.msra.mxu0 %v105
    %137 = vmatprep.subr.bf16.mxu0 0
    %138 = vmatpush2.bf16.msra.mxu0 0
    %139 = vmatprep.subr.bf16.mxu0 0
    %140 = vmatpush2.bf16.msra.mxu0 0
    %141 = vmatprep.subr.bf16.mxu0 0
    %142 = vmatpush2.bf16.msra.mxu0 0
    %143 = vmatprep.subr.bf16.mxu0 0
    %144 = vmatpush2.bf16.msra.mxu0 0
    %145 = vmatprep.subr.bf16.mxu0 0
    %146 = vmatpush2.bf16.msra.mxu0 0
    %147 = vmatprep.subr.bf16.mxu0 0
    %148 = vmatpush2.bf16.msra.mxu0 0
    %149 = vmatprep.subr.bf16.mxu0 0
    %150 = vmatpush2.bf16.msra.mxu0 0
    %151 = vmatprep.subr.bf16.mxu0 0
    %152 = vmatpush2.bf16.msra.mxu0 0
    %153 = vmatprep.mubr.bf16.mxu0 0
    %154 = vmatmul.mubr.bf16.gmra.mxu0 %v56
    %v155 = vpop.f32.mrf.mxu0
    %v156 = vadd.f32 0.0, %v155
    %v157 = vpop.f32.mrf.mxu0
    %v158 = vpop.f32.mrf.mxu0
    %v159 = vpop.f32.mrf.mxu0
    %160 = vdwg.mxu0
    %v161 = vpack.c.bf16 %v156, %v156
    %v162 = vld [vmem:[#allocation5] sm:$0xff]
    %v163 = vld [vmem:[#allocation5 + $0x8] sm:$0xff]
    %v164 = vld [vmem:[#allocation5 + $0x10] sm:$0xff]
    %v165 = vld [vmem:[#allocation5 + $0x18] sm:$0xff]
    %v166 = vld [vmem:[#allocation5 + $0x20] sm:$0xff]
    %v167 = vld [vmem:[#allocation5 + $0x28] sm:$0xff]
    %v168 = vld [vmem:[#allocation5 + $0x30] sm:$0xff]
    %v169 = vld [vmem:[#allocation5 + $0x38] sm:$0xff]
    %v170 = vld [vmem:[#allocation5 + $0x40] sm:$0xff]
    %v171 = vld [vmem:[#allocation5 + $0x48] sm:$0xff]
    %v172 = vld [vmem:[#allocation5 + $0x50] sm:$0xff]
    %v173 = vld [vmem:[#allocation5 + $0x58] sm:$0xff]
    %v174 = vld [vmem:[#allocation5 + $0x60] sm:$0xff]
    %v175 = vld [vmem:[#allocation5 + $0x68] sm:$0xff]
    %v176 = vld [vmem:[#allocation5 + $0x70] sm:$0xff]
    %v177 = vld [vmem:[#allocation5 + $0x78] sm:$0xff]
    %v178 = vld [vmem:[#allocation5 + $0x80] sm:$0xff]
    %v179 = vld [vmem:[#allocation5 + $0x88] sm:$0xff]
    %v180 = vld [vmem:[#allocation5 + $0x90] sm:$0xff]
    %v181 = vld [vmem:[#allocation5 + $0x98] sm:$0xff]
    %v182 = vld [vmem:[#allocation5 + $0xa0] sm:$0xff]
    %v183 = vld [vmem:[#allocation5 + $0xa8] sm:$0xff]
    %v184 = vld [vmem:[#allocation5 + $0xb0] sm:$0xff]
    %v185 = vld [vmem:[#allocation5 + $0xb8] sm:$0xff]
    %v186 = vld [vmem:[#allocation5 + $0xc0] sm:$0xff]
    %v187 = vld [vmem:[#allocation5 + $0xc8] sm:$0xff]
    %v188 = vld [vmem:[#allocation5 + $0xd0] sm:$0xff]
    %v189 = vld [vmem:[#allocation5 + $0xd8] sm:$0xff]
    %v190 = vld [vmem:[#allocation5 + $0xe0] sm:$0xff]
    %v191 = vld [vmem:[#allocation5 + $0xe8] sm:$0xff]
    %v192 = vld [vmem:[#allocation5 + $0xf0] sm:$0xff]
    %v193 = vld [vmem:[#allocation5 + $0xf8] sm:$0xff]
    %v194 = vld [vmem:[%s3] sm:$0xf]
    %v196 = vlaneseq
    %v197 = vshrl.u32 %v196, 7
    %v198 = vsub.s32 0, %v197
    %v199 = vrot.slane %v194, %v198
    %v200 = vlaneseq
    %v201 = vshrl.u32 %v200, 7
    %v202 = vsub.s32 1, %v201
    %v203 = vrot.slane %v194, %v202
    %v204 = vlaneseq
    %v205 = vshrl.u32 %v204, 7
    %v206 = vsub.s32 2, %v205
    %v207 = vrot.slane %v194, %v206
    %v208 = vlaneseq
    %v209 = vshrl.u32 %v208, 7
    %v210 = vsub.s32 3, %v209
    %v211 = vrot.slane %v194, %v210
    %v248 = vunpack.c.l.b16 %v162
    %v249 = vunpack.c.h.b16 %v162
    %v250 = vunpack.c.l.b16 %v163
    %v251 = vunpack.c.h.b16 %v163
    %v252 = vunpack.c.l.b16 %v164
    %v253 = vunpack.c.h.b16 %v164
    %v254 = vunpack.c.l.b16 %v165
    %v255 = vunpack.c.h.b16 %v165
    %v256 = vunpack.c.l.b16 %v166
    %v257 = vunpack.c.h.b16 %v166
    %v258 = vunpack.c.l.b16 %v167
    %v259 = vunpack.c.h.b16 %v167
    %v260 = vunpack.c.l.b16 %v168
    %v261 = vunpack.c.h.b16 %v168
    %v262 = vunpack.c.l.b16 %v169
    %v263 = vunpack.c.h.b16 %v169
    %v264 = vunpack.c.l.b16 %v170
    %v265 = vunpack.c.h.b16 %v170
    %v266 = vunpack.c.l.b16 %v171
    %v267 = vunpack.c.h.b16 %v171
    %v268 = vunpack.c.l.b16 %v172
    %v269 = vunpack.c.h.b16 %v172
    %v270 = vunpack.c.l.b16 %v173
    %v271 = vunpack.c.h.b16 %v173
    %v272 = vunpack.c.l.b16 %v174
    %v273 = vunpack.c.h.b16 %v174
    %v274 = vunpack.c.l.b16 %v175
    %v275 = vunpack.c.h.b16 %v175
    %v276 = vunpack.c.l.b16 %v176
    %v277 = vunpack.c.h.b16 %v176
    %v278 = vunpack.c.l.b16 %v177
    %v279 = vunpack.c.h.b16 %v177
    %v280 = vunpack.c.l.b16 %v178
    %v281 = vunpack.c.h.b16 %v178
    %v282 = vunpack.c.l.b16 %v179
    %v283 = vunpack.c.h.b16 %v179
    %v284 = vunpack.c.l.b16 %v180
    %v285 = vunpack.c.h.b16 %v180
    %v286 = vunpack.c.l.b16 %v181
    %v287 = vunpack.c.h.b16 %v181
    %v288 = vunpack.c.l.b16 %v182
    %v289 = vunpack.c.h.b16 %v182
    %v290 = vunpack.c.l.b16 %v183
    %v291 = vunpack.c.h.b16 %v183
    %v292 = vunpack.c.l.b16 %v184
    %v293 = vunpack.c.h.b16 %v184
    %v294 = vunpack.c.l.b16 %v185
    %v295 = vunpack.c.h.b16 %v185
    %v296 = vunpack.c.l.b16 %v186
    %v297 = vunpack.c.h.b16 %v186
    %v298 = vunpack.c.l.b16 %v187
    %v299 = vunpack.c.h.b16 %v187
    %v300 = vunpack.c.l.b16 %v188
    %v301 = vunpack.c.h.b16 %v188
    %v302 = vunpack.c.l.b16 %v189
    %v303 = vunpack.c.h.b16 %v189
    %v304 = vunpack.c.l.b16 %v190
    %v305 = vunpack.c.h.b16 %v190
    %v306 = vunpack.c.l.b16 %v191
    %v307 = vunpack.c.h.b16 %v191
    %v308 = vunpack.c.l.b16 %v192
    %v309 = vunpack.c.h.b16 %v192
    %v310 = vunpack.c.l.b16 %v193
    %v311 = vunpack.c.h.b16 %v193
    %v312 = vpack.c.b16 %v252, %v248
    %v313 = vpack.c.b16 %v253, %v249
    %v314 = vpack.c.b16 %v254, %v250
    %v315 = vpack.c.b16 %v255, %v251
    %v316 = vpack.c.b16 %v260, %v256
    %v317 = vpack.c.b16 %v261, %v257
    %v318 = vpack.c.b16 %v262, %v258
    %v319 = vpack.c.b16 %v263, %v259
    %v320 = vpack.c.b16 %v268, %v264
    %v321 = vpack.c.b16 %v269, %v265
    %v322 = vpack.c.b16 %v270, %v266
    %v323 = vpack.c.b16 %v271, %v267
    %v324 = vpack.c.b16 %v276, %v272
    %v325 = vpack.c.b16 %v277, %v273
    %v326 = vpack.c.b16 %v278, %v274
    %v327 = vpack.c.b16 %v279, %v275
    %v328 = vpack.c.b16 %v284, %v280
    %v329 = vpack.c.b16 %v285, %v281
    %v330 = vpack.c.b16 %v286, %v282
    %v331 = vpack.c.b16 %v287, %v283
    %v332 = vpack.c.b16 %v292, %v288
    %v333 = vpack.c.b16 %v293, %v289
    %v334 = vpack.c.b16 %v294, %v290
    %v335 = vpack.c.b16 %v295, %v291
    %v336 = vpack.c.b16 %v300, %v296
    %v337 = vpack.c.b16 %v301, %v297
    %v338 = vpack.c.b16 %v302, %v298
    %v339 = vpack.c.b16 %v303, %v299
    %v340 = vpack.c.b16 %v308, %v304
    %v341 = vpack.c.b16 %v309, %v305
    %v342 = vpack.c.b16 %v310, %v306
    %v343 = vpack.c.b16 %v311, %v307
    %376 = vmatprep.subr.bf16.mxu0 %v341
    %377 = vmatpush1.bf16.msra.mxu0 %v340
    %378 = vmatprep.subr.bf16.mxu0 %v337
    %379 = vmatpush1.bf16.msra.mxu0 %v336
    %380 = vmatprep.subr.bf16.mxu0 %v333
    %381 = vmatpush1.bf16.msra.mxu0 %v332
    %382 = vmatprep.subr.bf16.mxu0 %v329
    %383 = vmatpush1.bf16.msra.mxu0 %v328
    %384 = vmatprep.subr.bf16.mxu0 %v325
    %385 = vmatpush1.bf16.msra.mxu0 %v324
    %386 = vmatprep.subr.bf16.mxu0 %v321
    %387 = vmatpush1.bf16.msra.mxu0 %v320
    %388 = vmatprep.subr.bf16.mxu0 %v317
    %389 = vmatpush1.bf16.msra.mxu0 %v316
    %390 = vmatprep.subr.bf16.mxu0 %v313
    %391 = vmatpush1.bf16.msra.mxu0 %v312
    %392 = vmatprep.subr.bf16.mxu0 0
    %393 = vmatpush2.bf16.msra.mxu0 0
    %394 = vmatprep.subr.bf16.mxu0 0
    %395 = vmatpush2.bf16.msra.mxu0 0
    %396 = vmatprep.subr.bf16.mxu0 0
    %397 = vmatpush2.bf16.msra.mxu0 0
    %398 = vmatprep.subr.bf16.mxu0 0
    %399 = vmatpush2.bf16.msra.mxu0 0
    %400 = vmatprep.subr.bf16.mxu0 0
    %401 = vmatpush2.bf16.msra.mxu0 0
    %402 = vmatprep.subr.bf16.mxu0 0
    %403 = vmatpush2.bf16.msra.mxu0 0
    %404 = vmatprep.subr.bf16.mxu0 0
    %405 = vmatpush2.bf16.msra.mxu0 0
    %406 = vmatprep.subr.bf16.mxu0 0
    %407 = vmatpush2.bf16.msra.mxu0 0
    %408 = vmatprep.mubr.bf16.mxu0 0
    %409 = vmatmul.mubr.bf16.gmra.mxu0 %v161
    %v410 = vpop.f32.mrf.mxu0
    %v411 = vadd.f32 %v199, %v410
    %v412 = vpop.f32.mrf.mxu0
    %v413 = vadd.f32 %v203, %v412
    %v414 = vpop.f32.mrf.mxu0
    %v415 = vpop.f32.mrf.mxu0
    %416 = vdwg.mxu0
    %417 = vmatprep.subr.bf16.mxu0 %v343
    %418 = vmatpush1.bf16.msra.mxu0 %v342
    %419 = vmatprep.subr.bf16.mxu0 %v339
    %420 = vmatpush1.bf16.msra.mxu0 %v338
    %421 = vmatprep.subr.bf16.mxu0 %v335
    %422 = vmatpush1.bf16.msra.mxu0 %v334
    %423 = vmatprep.subr.bf16.mxu0 %v331
    %424 = vmatpush1.bf16.msra.mxu0 %v330
    %425 = vmatprep.subr.bf16.mxu0 %v327
    %426 = vmatpush1.bf16.msra.mxu0 %v326
    %427 = vmatprep.subr.bf16.mxu0 %v323
    %428 = vmatpush1.bf16.msra.mxu0 %v322
    %429 = vmatprep.subr.bf16.mxu0 %v319
    %430 = vmatpush1.bf16.msra.mxu0 %v318
    %431 = vmatprep.subr.bf16.mxu0 %v315
    %432 = vmatpush1.bf16.msra.mxu0 %v314
    %433 = vmatprep.subr.bf16.mxu0 0
    %434 = vmatpush2.bf16.msra.mxu0 0
    %435 = vmatprep.subr.bf16.mxu0 0
    %436 = vmatpush2.bf16.msra.mxu0 0
    %437 = vmatprep.subr.bf16.mxu0 0
    %438 = vmatpush2.bf16.msra.mxu0 0
    %439 = vmatprep.subr.bf16.mxu0 0
    %440 = vmatpush2.bf16.msra.mxu0 0
    %441 = vmatprep.subr.bf16.mxu0 0
    %442 = vmatpush2.bf16.msra.mxu0 0
    %443 = vmatprep.subr.bf16.mxu0 0
    %444 = vmatpush2.bf16.msra.mxu0 0
    %445 = vmatprep.subr.bf16.mxu0 0
    %446 = vmatpush2.bf16.msra.mxu0 0
    %447 = vmatprep.subr.bf16.mxu0 0
    %448 = vmatpush2.bf16.msra.mxu0 0
    %449 = vmatprep.mubr.bf16.mxu0 0
    %450 = vmatmul.mubr.bf16.gmra.mxu0 %v161
    %v451 = vpop.f32.mrf.mxu0
    %v452 = vadd.f32 %v207, %v451
    %v453 = vpop.f32.mrf.mxu0
    %v454 = vadd.f32 %v211, %v453
    %v455 = vpop.f32.mrf.mxu0
    %v456 = vpop.f32.mrf.mxu0
    %457 = vdwg.mxu0
    %458 = vst [vmem:[#allocation7] sm:$0xff] %v411
    %459 = vst [vmem:[#allocation7 + $0x8] sm:$0xff] %v413
    %460 = vst [vmem:[#allocation7 + $0x10] sm:$0xff] %v452
    %461 = vst [vmem:[#allocation7 + $0x18] sm:$0xff] %v454
    // Predicated region
    $region26: #{tpu_custom_call.1} parent=1 // pred_check
      _
    $region27: #{tpu_custom_call.1} parent=1 // pred_check_branch
      %463 = sbr.rel (0) target = $region29
    $region28: #{tpu_custom_call.1} parent=1 // pred_region
      %s465 = ssub.s32 512, 512
      %466 = vsyncadd [#allocation4], %s465
      %s468 = sshll.u32 [#allocation7], 4
      %s469 = int_to_ptr.vmem [resolvable:$true] %s468
      %471 = dma.vmem_to_hbm [thread:$0]  %s469, 512, %s4, [#allocation4]
    $region29: #{tpu_custom_call.1} parent=1 // pred_fallthru
      _
    // Predicated region
    $region30: #{tpu_custom_call.1} parent=1 // pred_check
      _
    $region31: #{tpu_custom_call.1} parent=1 // pred_check_branch
      %473 = sbr.rel (0) target = $region33
    $region32: #{tpu_custom_call.1} parent=1 // pred_region
      %474 = dma.done [#allocation4], 512
    $region33: #{tpu_custom_call.1} parent=1 // pred_fallthru
      _
    %475 = vsyncpa [#allocation3], 1
    %476 = vsyncpa [#allocation6], 1
    %477 = vsyncpa [#allocation4], 1

</llo_original>
